<compile_context>
chip_gen: v6e
topology: v6e:2x2x1
jax: 0.10.0
libtpu: 0.0.40
codegen_flags: <defaults>
</compile_context>

<pallas_src>
import functools

import jax
import jax.numpy as jnp
from jax.experimental import pallas as pl
from jax.experimental.pallas import tpu as pltpu


def _round_up(n, m):
    return ((n + m - 1) // m) * m


def _linear_head_kernel(x_ref, w_ref, b_ref, o_ref):
    # x_ref: (rows_tile, Dpack) VMEM tile (`pack` original rows per packed row)
    # w_ref: (Dpack, n_out)     VMEM block-replicated weight, grid-resident
    # b_ref: (1,)               SMEM scalar bias
    # o_ref: (rows_tile, n_out) column j == logit of packed row j
    acc = jnp.dot(x_ref[...].astype(jnp.float32), w_ref[...],
                  preferred_element_type=jnp.float32)
    o_ref[...] = (acc + b_ref[0]).astype(o_ref.dtype)


@functools.partial(jax.jit, static_argnames=("block_batch",))
def guest_top_model_forward(x, weight, bias, *, block_batch=32768):
    """Pallas equivalent of GuestTopModel: y = x @ weight.T + bias.

    Args:
      x:      (batch, input_dim) float array
      weight: (1, input_dim) float32 (PyTorch nn.Linear layout)
      bias:   (1,) float32
      block_batch: original rows per grid step (rounded to alignment)
    Returns:
      (batch, 1) array in x.dtype
    """
    batch, input_dim = x.shape

    # Pack factor: fold `pack` consecutive rows into one lane-dense row so the
    # minor dimension fills 128 lanes (input_dim=32 -> pack=4, d_pack=128).
    if input_dim < 128 and 128 % input_dim == 0:
        pack = 128 // input_dim
    else:
        pack = 1
    d_pack = pack * input_dim
    n_out = max(8, pack)

    # Block-replicated weight (kept in float32 — never downcast): column j
    # holds w in rows j*D:(j+1)*D, so (x_packed @ wblk)[r, j] == x[pack*r+j]@w.
    w = weight.reshape(input_dim).astype(jnp.float32)
    wblk = jnp.kron(jnp.eye(pack, dtype=jnp.float32), w.reshape(input_dim, 1))
    if n_out > pack:
        wblk = jnp.pad(wblk, ((0, 0), (0, n_out - pack)))
    b_vec = bias.reshape(1).astype(jnp.float32)

    # Batch tile in original rows: multiple of 8*pack so the packed input and
    # output blocks satisfy the (8, 128) tiling rules.
    align = 8 * pack
    bt = min(_round_up(block_batch, align), _round_up(batch, align))
    padded = _round_up(batch, bt)
    num_steps = padded // bt
    if num_steps > 1 and num_steps % 2 == 1:
        # Keep the parallel axis even so v7x's two TensorCores stay balanced.
        padded += bt
        num_steps += 1

    if padded != batch:
        x = jnp.pad(x, ((0, padded - batch), (0, 0)))
    x_packed = x.reshape(padded // pack, d_pack)  # free row-major reshape
    rows_tile = bt // pack

    out = pl.pallas_call(
        _linear_head_kernel,
        out_shape=jax.ShapeDtypeStruct((padded // pack, n_out), jnp.float32),
        grid_spec=pltpu.PrefetchScalarGridSpec(
            num_scalar_prefetch=0,
            grid=(num_steps,),
            in_specs=[
                # Streamed lane-dense batch tiles.
                pl.BlockSpec((rows_tile, d_pack), lambda i: (i, 0)),
                # Tiny weight block: same index every step -> VMEM-resident.
                pl.BlockSpec((d_pack, n_out), lambda i: (0, 0)),
                # Bias scalar in SMEM (untiled).
                pl.BlockSpec(memory_space=pltpu.MemorySpace.SMEM),
            ],
            out_specs=pl.BlockSpec((rows_tile, n_out), lambda i: (i, 0)),
        ),
        compiler_params=pltpu.CompilerParams(
            dimension_semantics=("parallel",),
        ),
    )(x_packed, wblk, b_vec)

    # Columns 0..pack-1 of packed row r are logits of rows pack*r .. pack*r+pack-1.
    y = out[:, :pack].reshape(padded)[:batch]
    return y.reshape(batch, 1).astype(x.dtype)
    # TODO(synk): if x comes from a preceding Pallas kernel (the bottom model),
    # fuse this row-dot + bias as its epilogue to skip the extra HBM read of x.


if __name__ == "__main__":
    input_dim = 32  # hidden size fed from the bottom model

    key = jax.random.PRNGKey(0)
    kx, kw, kb, kx2, kx3, kw3, kb3 = jax.random.split(key, 7)

    # Deterministic, PyTorch-like init: U(-1/sqrt(in), 1/sqrt(in))
    bound = 1.0 / jnp.sqrt(jnp.float32(input_dim))
    weight = jax.random.uniform(kw, (1, input_dim), jnp.float32, -bound, bound)
    bias = jax.random.uniform(kb, (1,), jnp.float32, -bound, bound)

    # Small case (typical tiny head input): batch=2, packed path (pack=4).
    x = jax.random.normal(kx, (2, input_dim), dtype=jnp.float32)
    y = jax.block_until_ready(guest_top_model_forward(x, weight, bias))
    y_ref = x @ weight.T + bias
    assert y.shape == (2, 1)
    assert jnp.allclose(y, y_ref, atol=1e-5, rtol=1e-5)

    # Multi-tile case: exercises the tiled grid, tail padding and the even-step
    # balancing of the parallel batch axis, with a small block_batch.
    x2 = jax.random.normal(kx2, (300, input_dim), dtype=jnp.float32)
    y2 = jax.block_until_ready(
        guest_top_model_forward(x2, weight, bias, block_batch=128))
    y2_ref = x2 @ weight.T + bias
    assert y2.shape == (300, 1)
    assert jnp.allclose(y2, y2_ref, atol=1e-5, rtol=1e-5)

    # General input_dim that does not divide 128 (pack=1 fallback path).
    d3 = 40
    b3 = 1.0 / jnp.sqrt(jnp.float32(d3))
    w3 = jax.random.uniform(kw3, (1, d3), jnp.float32, -b3, b3)
    bb3 = jax.random.uniform(kb3, (1,), jnp.float32, -b3, b3)
    x3 = jax.random.normal(kx3, (5, d3), dtype=jnp.float32)
    y3 = jax.block_until_ready(guest_top_model_forward(x3, w3, bb3))
    y3_ref = x3 @ w3.T + bb3
    assert y3.shape == (5, 1)
    assert jnp.allclose(y3, y3_ref, atol=1e-5, rtol=1e-5)

    print("KERNEL_OK")
</pallas_src>

<mosaic_0001>
module attributes {stable_mosaic.version = 11 : i64} {
  func.func @_linear_head_kernel(%arg0: i32, %arg1: memref<8x128xf32, #tpu.memory_space<vmem>>, %arg2: memref<128x8xf32, #tpu.memory_space<vmem>>, %arg3: memref<1xf32, #tpu.memory_space<smem>>, %arg4: memref<8x8xf32, #tpu.memory_space<vmem>>) attributes {dimension_semantics = [#tpu.dimension_semantics<parallel>], iteration_bounds = array<i64: 1>, scalar_prefetch = 0 : i64, scratch_operands = 0 : i64, tpu.core_type = #tpu.core_type<tc>, window_params = [{transform_indices = @transform_0, window_bounds = array<i64: 8, 128>}, {pipeline_mode = #tpu.pipeline_mode<synchronous>, transform_indices = @transform_1, window_bounds = array<i64: 128, 8>}, {transform_indices = @transform_2, window_bounds = array<i64: 1>}, {transform_indices = @transform_3, window_bounds = array<i64: 8, 8>}]} {
    %c0 = arith.constant 0 : index
    %c0_0 = arith.constant 0 : index
    %0 = vector.load %arg1[%c0, %c0_0] : memref<8x128xf32, #tpu.memory_space<vmem>>, vector<8x128xf32>
    %c0_1 = arith.constant 0 : index
    %c0_2 = arith.constant 0 : index
    %1 = vector.load %arg2[%c0_1, %c0_2] : memref<128x8xf32, #tpu.memory_space<vmem>>, vector<128x8xf32>
    %cst = arith.constant dense<0.000000e+00> : vector<8x8xf32>
    %2 = tpu.matmul %0, %1, %cst {dimension_numbers = #tpu.dot_dimension_numbers<[1], [0], [0], [1], [0, 0, 1, 1], [], []>} : vector<8x128xf32>, vector<128x8xf32>, vector<8x8xf32> -> vector<8x8xf32>
    %c0_3 = arith.constant 0 : index
    %3 = memref.load %arg3[%c0_3] : memref<1xf32, #tpu.memory_space<smem>>
    %4 = vector.broadcast %3 : f32 to vector<8x8xf32>
    %5 = arith.addf %2, %4 : vector<8x8xf32>
    %c0_4 = arith.constant 0 : index
    %c0_5 = arith.constant 0 : index
    %6 = vector.load %arg4[%c0_4, %c0_5] : memref<8x8xf32, #tpu.memory_space<vmem>>, vector<8x8xf32>
    tpu.vector_store %arg4[%c0_4, %c0_5], %5 {strides = array<i32>} : memref<8x8xf32, #tpu.memory_space<vmem>>, vector<8x8xf32>,
    return
  }
  func.func @transform_0(%arg0: i32) -> (i32, i32) {
    %c0_i32 = arith.constant 0 : i32
    %c0_i32_0 = arith.constant 0 : i32
    return %arg0, %c0_i32 : i32, i32
  }
  func.func @transform_1(%arg0: i32) -> (i32, i32) {
    %c0_i32 = arith.constant 0 : i32
    %c0_i32_0 = arith.constant 0 : i32
    %c0_i32_1 = arith.constant 0 : i32
    return %c0_i32, %c0_i32_0 : i32, i32
  }
  func.func @transform_2(%arg0: i32) -> i32 {
    %c0_i32 = arith.constant 0 : i32
    %c0_i32_0 = arith.constant 0 : i32
    return %c0_i32 : i32
  }
  func.func @transform_3(%arg0: i32) -> (i32, i32) {
    %c0_i32 = arith.constant 0 : i32
    %c0_i32_0 = arith.constant 0 : i32
    return %arg0, %c0_i32 : i32, i32
  }
}

</mosaic_0001>

<llo_original>
// kernel: guest_top_model_forward.1
$region0: #{guest_top_model_forward.1}
  #allocation0 [shape = 'u32[]', space=smem, size = 0x4, offset = 0x4, fixed_abs, tag = 'smem constant byte address 0x4 - core index']
  #allocation1 [shape = 'u32[144,128]{1,0:T(1,128)}', space=vmem, size = 0x12000, scoped, tag = 'internal scratch']
  #allocation2 [shape = 'f32[1]{0:T(128)S(6)}', space=smem, size = 0x200, scoped, tag = 'scoped memory for guest_top_model_forward.1']
  %s0 = inlined_call_operand.vmem [shape: f32[8,128], index: 0, kind: input, shape index: {}]
  %s1 = inlined_call_operand.vmem [shape: f32[128,8], index: 1, kind: input, shape index: {}]
  %s2 = inlined_call_operand.<no memory space> [shape: f32[1], index: 2, kind: input, shape index: {}]
  %s3 = inlined_call_operand.vmem [shape: f32[8,8], index: 3, kind: output, shape index: {}]
  %s4 = sld [smem:[#allocation0]]
  $region22: #{guest_top_model_forward.1} parent=0
    _
  %s6 = ssub.s32 1, %s4
  %s7 = scalar_select 0, %s6, %s4
  %8 = sst [smem:[#allocation2]] %s2
  // Predicated region
  $region2: #{guest_top_model_forward.1} parent=0 // pred_check
    _
  $region3: #{guest_top_model_forward.1} parent=0 // pred_check_branch
    %10 = sbr.rel (0) target = $region5
  $region4: #{guest_top_model_forward.1} parent=0 // pred_region
    _
  $region5: #{guest_top_model_forward.1} parent=0 // pred_fallthru
    _
  // Predicated region
  $region6: #{guest_top_model_forward.1} parent=0 // pred_check
    _
  $region7: #{guest_top_model_forward.1} parent=0 // pred_check_branch
    %12 = sbr.rel (0) target = $region9
  $region8: #{guest_top_model_forward.1} parent=0 // pred_region
    _
  $region9: #{guest_top_model_forward.1} parent=0 // pred_fallthru
    _
  // Predicated region
  $region10: #{guest_top_model_forward.1} parent=0 // pred_check
    _
  $region11: #{guest_top_model_forward.1} parent=0 // pred_check_branch
    %14 = sbr.rel (0) target = $region13
  $region12: #{guest_top_model_forward.1} parent=0 // pred_region
    _
  $region13: #{guest_top_model_forward.1} parent=0 // pred_fallthru
    _
  %v15 = vld [vmem:[%s0] sm:$0xff]
  %v16 = vld [vmem:[%s1] sm:$0xff]
  %v17 = vld [vmem:[%s1 + $0x8] sm:$0xff]
  %v18 = vld [vmem:[%s1 + $0x10] sm:$0xff]
  %v19 = vld [vmem:[%s1 + $0x18] sm:$0xff]
  %v20 = vld [vmem:[%s1 + $0x20] sm:$0xff]
  %v21 = vld [vmem:[%s1 + $0x28] sm:$0xff]
  %v22 = vld [vmem:[%s1 + $0x30] sm:$0xff]
  %v23 = vld [vmem:[%s1 + $0x38] sm:$0xff]
  %v24 = vld [vmem:[%s1 + $0x40] sm:$0xff]
  %v25 = vld [vmem:[%s1 + $0x48] sm:$0xff]
  %v26 = vld [vmem:[%s1 + $0x50] sm:$0xff]
  %v27 = vld [vmem:[%s1 + $0x58] sm:$0xff]
  %v28 = vld [vmem:[%s1 + $0x60] sm:$0xff]
  %v29 = vld [vmem:[%s1 + $0x68] sm:$0xff]
  %v30 = vld [vmem:[%s1 + $0x70] sm:$0xff]
  %v31 = vld [vmem:[%s1 + $0x78] sm:$0xff]
  %s32 = sld [smem:[#allocation2]]
  %v33 = vstv %s32
  %34 = vmatprep.subr.mxu0 0.0
  %35 = vmatpush1.msra.mxu0 %v31
  %36 = vmatprep.subr.mxu0 0.0
  %37 = vmatpush1.msra.mxu0 %v30
  %38 = vmatprep.subr.mxu0 0.0
  %39 = vmatpush1.msra.mxu0 %v29
  %40 = vmatprep.subr.mxu0 0.0
  %41 = vmatpush1.msra.mxu0 %v28
  %42 = vmatprep.subr.mxu0 0.0
  %43 = vmatpush1.msra.mxu0 %v27
  %44 = vmatprep.subr.mxu0 0.0
  %45 = vmatpush1.msra.mxu0 %v26
  %46 = vmatprep.subr.mxu0 0.0
  %47 = vmatpush1.msra.mxu0 %v25
  %48 = vmatprep.subr.mxu0 0.0
  %49 = vmatpush1.msra.mxu0 %v24
  %50 = vmatprep.subr.mxu0 0.0
  %51 = vmatpush1.msra.mxu0 %v23
  %52 = vmatprep.subr.mxu0 0.0
  %53 = vmatpush1.msra.mxu0 %v22
  %54 = vmatprep.subr.mxu0 0.0
  %55 = vmatpush1.msra.mxu0 %v21
  %56 = vmatprep.subr.mxu0 0.0
  %57 = vmatpush1.msra.mxu0 %v20
  %58 = vmatprep.subr.mxu0 0.0
  %59 = vmatpush1.msra.mxu0 %v19
  %60 = vmatprep.subr.mxu0 0.0
  %61 = vmatpush1.msra.mxu0 %v18
  %62 = vmatprep.subr.mxu0 0.0
  %63 = vmatpush1.msra.mxu0 %v17
  %64 = vmatprep.subr.mxu0 0.0
  %65 = vmatpush1.msra.mxu0 %v16
  %66 = vmatprep.subr.mxu0 0.0
  %67 = vmatpush2.msra.mxu0 0.0
  %68 = vmatprep.subr.mxu0 0.0
  %69 = vmatpush2.msra.mxu0 0.0
  %70 = vmatprep.subr.mxu0 0.0
  %71 = vmatpush2.msra.mxu0 0.0
  %72 = vmatprep.subr.mxu0 0.0
  %73 = vmatpush2.msra.mxu0 0.0
  %74 = vmatprep.subr.mxu0 0.0
  %75 = vmatpush2.msra.mxu0 0.0
  %76 = vmatprep.subr.mxu0 0.0
  %77 = vmatpush2.msra.mxu0 0.0
  %78 = vmatprep.subr.mxu0 0.0
  %79 = vmatpush2.msra.mxu0 0.0
  %80 = vmatprep.subr.mxu0 0.0
  %81 = vmatpush2.msra.mxu0 0.0
  %82 = vmatprep.subr.mxu0 0.0
  %83 = vmatpush2.msra.mxu0 0.0
  %84 = vmatprep.subr.mxu0 0.0
  %85 = vmatpush2.msra.mxu0 0.0
  %86 = vmatprep.subr.mxu0 0.0
  %87 = vmatpush2.msra.mxu0 0.0
  %88 = vmatprep.subr.mxu0 0.0
  %89 = vmatpush2.msra.mxu0 0.0
  %90 = vmatprep.subr.mxu0 0.0
  %91 = vmatpush2.msra.mxu0 0.0
  %92 = vmatprep.subr.mxu0 0.0
  %93 = vmatpush2.msra.mxu0 0.0
  %94 = vmatprep.subr.mxu0 0.0
  %95 = vmatpush2.msra.mxu0 0.0
  %96 = vmatprep.subr.mxu0 0.0
  %97 = vmatpush2.msra.mxu0 0.0
  %98 = vmatprep.mubr.f32.mxu0 0.0
  %99 = vmatmul.mubr.f32.gmra.mxu0 %v15
  %v100 = vpop.f32.mrf.mxu0
  %v101 = vadd.f32 %v33, %v100
  %v102 = vpop.f32.mrf.mxu0
  %103 = vdwg.mxu0
  %vm104 = vcmask 64512
  %105 = vst.msk [vmem:[%s3] sm:$0xff] %vm104, %v101
  // Predicated region
  $region14: #{guest_top_model_forward.1} parent=0 // pred_check
    _
  $region15: #{guest_top_model_forward.1} parent=0 // pred_check_branch
    %107 = sbr.rel (0) target = $region17
  $region16: #{guest_top_model_forward.1} parent=0 // pred_region
    _
  $region17: #{guest_top_model_forward.1} parent=0 // pred_fallthru
    _
  // Predicated region
  $region18: #{guest_top_model_forward.1} parent=0 // pred_check
    _
  $region19: #{guest_top_model_forward.1} parent=0 // pred_check_branch
    %109 = sbr.rel (0) target = $region21
  $region20: #{guest_top_model_forward.1} parent=0 // pred_region
    _
  $region21: #{guest_top_model_forward.1} parent=0 // pred_fallthru
    _

</llo_original>
